<compile_context>
chip_gen: v5e
topology: v5e:2x2
jax: 0.10.0
libtpu: 0.0.40
codegen_flags: <defaults>
</compile_context>

<pallas_src>
import jax
import jax.numpy as jnp
from jax.experimental import pallas as pl
from jax.experimental.pallas import tpu as pltpu

C_IN = 3
C_OUT = 256
NEG_SLOPE = 0.2


def _round_up(x, m):
    return ((x + m - 1) // m) * m


def _max_spatial_tile():
    """Largest spatial tile (multiple of 128) whose double-buffered f32 output
    slab uses ~1/4 of physical VMEM, capped at 8192 (per perf review)."""
    try:
        vmem_bytes = pltpu.get_tpu_info().vmem_capacity_bytes
    except Exception:  # conservative fallback: assume v7x-sized (64 MiB) VMEM
        vmem_bytes = 64 << 20
    budget = vmem_bytes // 4          # for the double-buffered output slab
    tm = budget // (2 * C_OUT * 4)
    return max(512, min(8192, (tm // 128) * 128))


def _geom_head_kernel(x_ref, w_ref, b_ref, o_ref):
    # x_ref: (TN, C_IN, TM) f32    input pixels (TN batch rows, TM pixels each)
    # w_ref: (C_OUT, C_IN) f32     resident conv weight
    # b_ref: (C_OUT, 1) f32        resident bias (broadcast over lanes)
    # o_ref: (TN, C_OUT, TM)       output activations
    w = w_ref[...]
    bias = b_ref[...]
    for i in range(x_ref.shape[0]):   # static, tiny trip count
        acc = jnp.dot(w, x_ref[i], preferred_element_type=jnp.float32) + bias
        # LeakyReLU(0.2): max(x, 0.2*x) is exact for slopes in (0, 1);
        # one fewer VALU op per output vreg than where(x>0, x, 0.2*x).
        o_ref[i] = jnp.maximum(acc, NEG_SLOPE * acc).astype(o_ref.dtype)


def geom_head(x_nchw, w, b, *, out_dtype=jnp.float32):
    """x_nchw: (N, 3, H, W) f32, w: (256, 3), b: (256,) -> (N, 256, H, W).

    Matches PyTorch GeomHead.forward (Conv2d(3, 256, 1) + LeakyReLU(0.2)).
    Pass out_dtype=jnp.bfloat16 to halve HBM write traffic if the consumer
    accepts bf16 activations (accumulation stays f32 in-kernel).
    """
    N, C, H, W = x_nchw.shape
    assert C == C_IN, (C, C_IN)
    HW = H * W

    # Free reshape: NCHW is contiguous in (H, W), so (N, C, H*W) is a view.
    x3 = x_nchw.reshape(N, C_IN, HW)
    b2 = b.reshape(C_OUT, 1)
    out_bytes = jnp.dtype(out_dtype).itemsize

    # --- tiling -------------------------------------------------------------
    # Spatial tile: multiple of 128 (lane width), VMEM-capacity capped.
    tm = min(_max_spatial_tile(), _round_up(HW, 128))
    # Small-feature-map path: block several batch rows per grid step so each
    # step still writes a large (~8 MiB) lane-dense output slab.
    target_out_tile = 8 << 20
    row_bytes = C_OUT * tm * out_bytes
    if row_bytes >= target_out_tile:
        tn = 1
    else:
        tn = int(min(N, max(1, target_out_tile // row_bytes)))

    # Grid-split guard (v7x megacore): make sure there are >= 2 grid steps so
    # both TensorCores get work; prefer shrinking the batch block first to
    # keep per-row writes as wide as possible.
    while pl.cdiv(N, tn) * pl.cdiv(HW, tm) < 2:
        if tn > 1:
            tn = -(-tn // 2)
        elif tm > 128:
            tm = max(128, _round_up(tm // 2, 128))
        else:
            break  # genuinely single-step workload (N == 1, HW <= 128)

    grid = (pl.cdiv(N, tn), pl.cdiv(HW, tm))

    # VMEM footprint (double-buffered in/out + resident weight/bias) and an
    # explicit scoped-VMEM limit: v5e defaults to only 16 MiB which would
    # reject the 8192-pixel tiling; 40 MiB stays well under every
    # generation's physical VMEM (64 MiB on v7x, 128 MiB on v5e/v6e).
    footprint = (2 * tn * tm * (C_OUT * out_bytes + C_IN * 4)
                 + (C_OUT * C_IN + C_OUT) * 4)
    vmem_limit = int(min(48 << 20, max(footprint + (8 << 20), 40 << 20)))

    cost = pl.CostEstimate(
        flops=2 * N * HW * C_OUT * C_IN,
        transcendentals=0,
        bytes_accessed=(4 * N * HW * C_IN + out_bytes * N * HW * C_OUT
                        + 4 * C_OUT * (C_IN + 1)),
    )

    out = pl.pallas_call(
        _geom_head_kernel,
        out_shape=jax.ShapeDtypeStruct((N, C_OUT, HW), out_dtype),
        grid_spec=pltpu.PrefetchScalarGridSpec(
            num_scalar_prefetch=0,
            grid=grid,
            in_specs=[
                # Input pixels: (tn batch rows) x (tm pixels). Partial trailing
                # blocks are handled by Pallas masked writeback -- no jnp.pad.
                pl.BlockSpec((tn, C_IN, tm), lambda i, j: (i, 0, j)),
                # Weight and bias stay resident in VMEM (constant index map).
                pl.BlockSpec((C_OUT, C_IN), lambda i, j: (0, 0)),
                pl.BlockSpec((C_OUT, 1), lambda i, j: (0, 0)),
            ],
            out_specs=pl.BlockSpec((tn, C_OUT, tm), lambda i, j: (i, 0, j)),
        ),
        compiler_params=pltpu.CompilerParams(
            # Both axes independent -> megacore sharding on v7x, no-op on
            # single-TC v5e/v6e.
            dimension_semantics=("parallel", "parallel"),
            vmem_limit_bytes=vmem_limit,
        ),
        cost_estimate=cost,
    )(x3, w, b2)

    # Free reshape back to NCHW.
    return out.reshape(N, C_OUT, H, W)


def init_params(key):
    # Deterministic synthetic init, shapes matching nn.Conv2d(3, 256, 1):
    # weight (256, 3, 1, 1), bias (256,). Stored as (C_OUT, C_IN) for the
    # W @ x formulation (no transpose needed).
    kw, kb = jax.random.split(key)
    fan_in = C_IN  # 3 * 1 * 1
    bound = 1.0 / jnp.sqrt(fan_in)
    w_conv = jax.random.uniform(kw, (C_OUT, C_IN, 1, 1), jnp.float32,
                                minval=-bound, maxval=bound)
    b = jax.random.uniform(kb, (C_OUT,), jnp.float32,
                           minval=-bound, maxval=bound)
    w = w_conv.reshape(C_OUT, C_IN)
    return w, b


if __name__ == "__main__":
    key = jax.random.PRNGKey(0)
    kx, kp = jax.random.split(key)

    # Small input consistent with the module: batch=2, channels=3, spatial=16.
    x = jax.random.normal(kx, (2, 3, 16, 16), jnp.float32)
    w, b = init_params(kp)

    out = geom_head(x, w, b)
    out = jax.block_until_ready(out)
    assert out.shape == (2, 256, 16, 16), out.shape
    assert out.dtype == jnp.float32, out.dtype

    # Reference check against plain-JAX 1x1 conv + leaky relu.
    ref = jnp.einsum("nchw,oc->nohw", x, w) + b[None, :, None, None]
    ref = jnp.where(ref > 0, ref, NEG_SLOPE * ref)
    assert jnp.allclose(out, ref, atol=1e-5, rtol=1e-5)

    print("KERNEL_OK")
</pallas_src>

<mosaic_0001>
module attributes {stable_mosaic.version = 11 : i64} {
  func.func @_geom_head_kernel(%arg0: i32, %arg1: i32, %arg2: memref<1x3x256xf32, #tpu.memory_space<vmem>>, %arg3: memref<256x3xf32, #tpu.memory_space<vmem>>, %arg4: memref<256x1xf32, #tpu.memory_space<vmem>>, %arg5: memref<1x256x256xf32, #tpu.memory_space<vmem>>) attributes {dimension_semantics = [#tpu.dimension_semantics<parallel>, #tpu.dimension_semantics<parallel>], iteration_bounds = array<i64: 2, 1>, scalar_prefetch = 0 : i64, scratch_operands = 0 : i64, tpu.core_type = #tpu.core_type<tc>, window_params = [{transform_indices = @transform_0, window_bounds = array<i64: 1, 3, 256>}, {pipeline_mode = #tpu.pipeline_mode<synchronous>, transform_indices = @transform_1, window_bounds = array<i64: 256, 3>}, {pipeline_mode = #tpu.pipeline_mode<synchronous>, transform_indices = @transform_2, window_bounds = array<i64: 256, 1>}, {transform_indices = @transform_3, window_bounds = array<i64: 1, 256, 256>}]} {
    %c0 = arith.constant 0 : index
    %c0_0 = arith.constant 0 : index
    %0 = vector.load %arg3[%c0, %c0_0] : memref<256x3xf32, #tpu.memory_space<vmem>>, vector<256x3xf32>
    %c0_1 = arith.constant 0 : index
    %c0_2 = arith.constant 0 : index
    %1 = vector.load %arg4[%c0_1, %c0_2] : memref<256x1xf32, #tpu.memory_space<vmem>>, vector<256x1xf32>
    %c0_3 = arith.constant 0 : index
    %c0_4 = arith.constant 0 : index
    %c0_5 = arith.constant 0 : index
    %2 = vector.load %arg2[%c0_3, %c0_4, %c0_5] : memref<1x3x256xf32, #tpu.memory_space<vmem>>, vector<1x3x256xf32>
    %3 = vector.shape_cast %2 : vector<1x3x256xf32> to vector<3x256xf32>
    %cst = arith.constant dense<0.000000e+00> : vector<256x256xf32>
    %4 = tpu.matmul %0, %3, %cst {dimension_numbers = #tpu.dot_dimension_numbers<[1], [0], [0], [1], [0, 0, 1, 1], [], []>} : vector<256x3xf32>, vector<3x256xf32>, vector<256x256xf32> -> vector<256x256xf32>
    %5 = vector.broadcast %1 : vector<256x1xf32> to vector<256x256xf32>
    %6 = arith.addf %4, %5 : vector<256x256xf32>
    %cst_6 = arith.constant 2.000000e-01 : f32
    %7 = vector.broadcast %cst_6 : f32 to vector<256x256xf32>
    %8 = arith.mulf %7, %6 : vector<256x256xf32>
    %9 = arith.maximumf %6, %8 : vector<256x256xf32>
    %c0_7 = arith.constant 0 : index
    %c0_8 = arith.constant 0 : index
    %c0_9 = arith.constant 0 : index
    %10 = vector.load %arg5[%c0_7, %c0_8, %c0_9] : memref<1x256x256xf32, #tpu.memory_space<vmem>>, vector<1x256x256xf32>
    %11 = vector.shape_cast %10 : vector<1x256x256xf32> to vector<256x256xf32>
    %12 = vector.shape_cast %9 : vector<256x256xf32> to vector<1x256x256xf32>
    tpu.vector_store %arg5[%c0_7, %c0_8, %c0_9], %12 {strides = array<i32>} : memref<1x256x256xf32, #tpu.memory_space<vmem>>, vector<1x256x256xf32>,
    return
  }
  func.func @transform_0(%arg0: i32, %arg1: i32) -> (i32, i32, i32) {
    %c0_i32 = arith.constant 0 : i32
    %c0_i32_0 = arith.constant 0 : i32
    return %arg0, %c0_i32, %arg1 : i32, i32, i32
  }
  func.func @transform_1(%arg0: i32, %arg1: i32) -> (i32, i32) {
    %c0_i32 = arith.constant 0 : i32
    %c0_i32_0 = arith.constant 0 : i32
    %c0_i32_1 = arith.constant 0 : i32
    return %c0_i32, %c0_i32_0 : i32, i32
  }
  func.func @transform_2(%arg0: i32, %arg1: i32) -> (i32, i32) {
    %c0_i32 = arith.constant 0 : i32
    %c0_i32_0 = arith.constant 0 : i32
    %c0_i32_1 = arith.constant 0 : i32
    return %c0_i32, %c0_i32_0 : i32, i32
  }
  func.func @transform_3(%arg0: i32, %arg1: i32) -> (i32, i32, i32) {
    %c0_i32 = arith.constant 0 : i32
    %c0_i32_0 = arith.constant 0 : i32
    return %arg0, %c0_i32, %arg1 : i32, i32, i32
  }
}

</mosaic_0001>

<llo_original>
// kernel: tpu_custom_call.1
$region0: #{tpu_custom_call.1}
  #allocation0 [shape = 'u32[]', space=smem, size = 0x4, offset = 0x4, fixed_abs, tag = 'smem constant byte address 0x4 - core index']
  #allocation1 [shape = 'u32[72,128]{1,0:T(1,128)}', space=vmem, size = 0x9000, scoped, tag = 'internal scratch']
  %s0 = inlined_call_operand.vmem [shape: f32[2,3,256], index: 0, kind: input, shape index: {}]
  %s1 = inlined_call_operand.vmem [shape: f32[256,3], index: 1, kind: input, shape index: {}]
  %s2 = inlined_call_operand.vmem [shape: f32[256,1], index: 2, kind: input, shape index: {}]
  %s3 = inlined_call_operand.hbm [shape: f32[2,256,256], index: 3, kind: output, shape index: {}]
  %s4 = sld [smem:[#allocation0]]
  $region45: #{tpu_custom_call.1} parent=0
    _
  %s6 = ssub.s32 1, %s4
  %s7 = scalar_select 0, %s6, %s4
  $region1: #{tpu_custom_call.1} parent=0
    #allocation2 [shape = 'u8[524288]{0}', space=vmem, size = 0x80000, scoped, tag = 'output window, operand 0']
    #allocation3 [shape = 's32[2]{0}', space=sflag, size = 0x8, scoped, tag = 'scoped memory for tpu_custom_call.1']
    %8 = vsyncpa [#allocation3], 0
    %s9 = scalar_lea.sflag [#allocation3], 1
    %10 = vsyncpa %s9, 0
    loop: start=0, step=1, limit=4
    $region2: #{tpu_custom_call.1} parent=1 // loop_pre_header
      _
    $region3: #{tpu_custom_call.1} parent=1 // loop_header
      %s12 = sphi 0, %s16
      %p13 = scmp.ge.s32.totalorder %s12, 4
      %s19 = sphi 0, %s31
      %s20 = sphi 0, %s27
      %s21 = sphi 0, %s19
      %s22 = sphi 0, %s20
      %s23 = sphi 0, %s21
      %s24 = sphi 0, %s22
      %s36 = sphi 0, %s38
      %s39 = sphi 0, %s36
      %s40 = sphi 0, %s39
      %s56 = sphi 0, %s40
      %s60 = sphi 0, %s60
      %s62 = sphi 0, %s60
      %s63 = sphi 0, %s62
      %s77 = sphi 0, %s63
      %s81 = sphi 0, %s81
      %s83 = sphi 0, %s81
      %s84 = sphi 0, %s83
      %s98 = sphi 0, %s84
      %s106 = sphi 0, %s108
      %s109 = sphi 0, %s106
      %s110 = sphi 0, %s109
      %s126 = sphi 0, %s110
    $region4: #{tpu_custom_call.1} parent=1 // loop_header_branch
      %15 = sbr.rel (%p13) target = $region8
    $region5: #{tpu_custom_call.1} parent=1 // loop_body
      %s17 = ssub.s32 %s12, 1
      %s18 = ssub.s32 %s12, 2
      %s25 = sadd.s32 1, %s20
      %p26 = scmp.ge.s32.totalorder %s25, 1
      %s27 = scalar_select %p26, 0, %s25
      %s28 = sadd.s32 1, %s19
      %s29 = scalar_select %p26, %s28, %s19
      %p30 = scmp.ge.s32.totalorder %s29, 2
      %s31 = scalar_select %p30, 0, %s29
      %s32 = ssub.s32 %s19, %s31
      %s33 = ssub.s32 %s20, %s27
      %s34 = sor.u32 %s32, %s33
      %p35 = scmp.eq.s32.totalorder %s34, 0
      %s37 = sadd.s32 %s36, 1
      %s38 = scalar_select %p35, %s36, %s37
      %p41 = pneg %p35
      %p42 = scmp.eq.s32.totalorder %s12, 1
      %p43 = por %p41, %p42
      %p44 = scmp.ne.s32.totalorder %s36, %s39
      %p45 = scmp.eq.s32.totalorder %s12, 0
      %p46 = por %p44, %p45
      %p47 = scmp.ne.s32.totalorder %s36, %s39
      %p48 = scmp.eq.s32.totalorder %s17, 1
      %p49 = por %p47, %p48
      %p50 = scmp.ne.s32.totalorder %s39, %s40
      %p51 = scmp.eq.s32.totalorder %s17, 0
      %p52 = por %p50, %p51
      %p53 = scmp.ne.s32.totalorder %s39, %s40
      %p54 = scmp.eq.s32.totalorder %s18, 1
      %p55 = por %p53, %p54
      %p57 = scmp.ne.s32.totalorder %s40, %s56
      %p58 = scmp.eq.s32.totalorder %s18, 0
      %p59 = por %p57, %p58
      %s61 = sadd.s32 %s60, 1
      %p64 = scmp.eq.s32.totalorder %s12, 1
      %p65 = scmp.ne.s32.totalorder %s60, %s62
      %p66 = scmp.eq.s32.totalorder %s12, 0
      %p67 = por %p65, %p66
      %p68 = scmp.ne.s32.totalorder %s60, %s62
      %p69 = scmp.eq.s32.totalorder %s17, 1
      %p70 = por %p68, %p69
      %p71 = scmp.ne.s32.totalorder %s62, %s63
      %p72 = scmp.eq.s32.totalorder %s17, 0
      %p73 = por %p71, %p72
      %p74 = scmp.ne.s32.totalorder %s62, %s63
      %p75 = scmp.eq.s32.totalorder %s18, 1
      %p76 = por %p74, %p75
      %p78 = scmp.ne.s32.totalorder %s63, %s77
      %p79 = scmp.eq.s32.totalorder %s18, 0
      %p80 = por %p78, %p79
      %s82 = sadd.s32 %s81, 1
      %p85 = scmp.eq.s32.totalorder %s12, 1
      %p86 = scmp.ne.s32.totalorder %s81, %s83
      %p87 = scmp.eq.s32.totalorder %s12, 0
      %p88 = por %p86, %p87
      %p89 = scmp.ne.s32.totalorder %s81, %s83
      %p90 = scmp.eq.s32.totalorder %s17, 1
      %p91 = por %p89, %p90
      %p92 = scmp.ne.s32.totalorder %s83, %s84
      %p93 = scmp.eq.s32.totalorder %s17, 0
      %p94 = por %p92, %p93
      %p95 = scmp.ne.s32.totalorder %s83, %s84
      %p96 = scmp.eq.s32.totalorder %s18, 1
      %p97 = por %p95, %p96
      %p99 = scmp.ne.s32.totalorder %s84, %s98
      %p100 = scmp.eq.s32.totalorder %s18, 0
      %p101 = por %p99, %p100
      %s102 = ssub.s32 %s19, %s31
      %s103 = ssub.s32 %s20, %s27
      %s104 = sor.u32 %s102, %s103
      %p105 = scmp.eq.s32.totalorder %s104, 0
      %s107 = sadd.s32 %s106, 1
      %s108 = scalar_select %p105, %s106, %s107
      %p111 = pneg %p105
      %p112 = scmp.eq.s32.totalorder %s12, 1
      %p113 = por %p111, %p112
      %p114 = scmp.ne.s32.totalorder %s106, %s109
      %p115 = scmp.eq.s32.totalorder %s12, 0
      %p116 = por %p114, %p115
      %p117 = scmp.ne.s32.totalorder %s106, %s109
      %p118 = scmp.eq.s32.totalorder %s17, 1
      %p119 = por %p117, %p118
      %p120 = scmp.ne.s32.totalorder %s109, %s110
      %p121 = scmp.eq.s32.totalorder %s17, 0
      %p122 = por %p120, %p121
      %p123 = scmp.ne.s32.totalorder %s109, %s110
      %p124 = scmp.eq.s32.totalorder %s18, 1
      %p125 = por %p123, %p124
      %p127 = scmp.ne.s32.totalorder %s110, %s126
      %p128 = scmp.eq.s32.totalorder %s18, 0
      %p129 = por %p127, %p128
      %p130 = scmp.le.s32.totalorder 1, %s12
      %p131 = scmp.lt.s32.totalorder %s12, 3
      %p132 = pnand %p130, %p131
      %p133 = pneg %p132
      // Predicated region
      $region9: #{tpu_custom_call.1} parent=5 // pred_check
        _
      $region10: #{tpu_custom_call.1} parent=5 // pred_check_branch
        %135 = sbr.rel (%p132) target = $region12
      $region11: #{tpu_custom_call.1} parent=5 // pred_region
        %s136 = ssub.s32 %s12, 1
        // Predicated region
        $region13: #{tpu_custom_call.1} parent=11 // pred_check
          %p137 = pneg %p73
        $region14: #{tpu_custom_call.1} parent=11 // pred_check_branch
          %139 = sbr.rel (%p137) target = $region16
        $region15: #{tpu_custom_call.1} parent=11 // pred_region
          _
        $region16: #{tpu_custom_call.1} parent=11 // pred_fallthru
          _
        // Predicated region
        $region17: #{tpu_custom_call.1} parent=11 // pred_check
          %p140 = pneg %p94
        $region18: #{tpu_custom_call.1} parent=11 // pred_check_branch
          %142 = sbr.rel (%p140) target = $region20
        $region19: #{tpu_custom_call.1} parent=11 // pred_region
          _
        $region20: #{tpu_custom_call.1} parent=11 // pred_fallthru
          _
      $region12: #{tpu_custom_call.1} parent=5 // pred_fallthru
        _
      %p143 = scmp.lt.s32.totalorder %s12, 2
      // Predicated region
      $region21: #{tpu_custom_call.1} parent=5 // pred_check
        %p144 = pneg %p143
      $region22: #{tpu_custom_call.1} parent=5 // pred_check_branch
        %146 = sbr.rel (%p144) target = $region24
      $region23: #{tpu_custom_call.1} parent=5 // pred_region
        // Predicated region
        $region25: #{tpu_custom_call.1} parent=23 // pred_check
          %p147 = pneg %p46
        $region26: #{tpu_custom_call.1} parent=23 // pred_check_branch
          %149 = sbr.rel (%p147) target = $region28
        $region27: #{tpu_custom_call.1} parent=23 // pred_region
          %s150 = smul.u32 2, %s20
          %p151 = scmp.lt.s32.totalorder %s19, 1
          %s152 = scalar_select %p151, %s19, 1
          %p153 = scmp.lt.s32.totalorder %s150, 1
          %s154 = scalar_select %p153, %s150, 1
          %s155 = smul.addr %s152, 2
          %s156 = sadd.s32 %s154, %s155
          %s157 = smul.addr %s156, 4
          %s158 = scalar_lea.vmem %s0, %s157
          %s159 = smul.u32 2, %s20
        $region28: #{tpu_custom_call.1} parent=23 // pred_fallthru
          _
      $region24: #{tpu_custom_call.1} parent=5 // pred_fallthru
        _
      %p160 = scmp.le.s32.totalorder 1, %s12
      %p161 = scmp.lt.s32.totalorder %s12, 3
      %p162 = pnand %p160, %p161
      %p163 = pneg %p162
      // Predicated region
      $region29: #{tpu_custom_call.1} parent=5 // pred_check
        _
      $region30: #{tpu_custom_call.1} parent=5 // pred_check_branch
        %165 = sbr.rel (%p162) target = $region32
      $region31: #{tpu_custom_call.1} parent=5 // pred_region
        %s166 = ssub.s32 %s12, 1
        %s167 = smul.u32 2, %s22
        %p168 = scmp.lt.s32.totalorder %s21, 1
        %s169 = scalar_select %p168, %s21, 1
        %p170 = scmp.lt.s32.totalorder %s167, 1
        %s171 = scalar_select %p170, %s167, 1
        %s172 = smul.addr %s169, 2
        %s173 = sadd.s32 %s171, %s172
        %s174 = smul.addr %s173, 4
        %s175 = scalar_lea.vmem %s0, %s174
        %p176 = pneg %p52
        %p177 = pneg %p49
        %p178 = pneg %p73
        %p179 = pneg %p70
        %p180 = pneg %p94
        %p181 = pneg %p91
        %p182 = pneg %p122
        %p183 = pneg %p119
        %s184 = sand.u32 %s109, 1
        %s185 = scalar_lea.sflag [#allocation3], %s184
        %s186 = sand.u32 %s109, 1
        %s187 = smul.addr %s186, 512
        %s188 = scalar_lea.vmem [#allocation2], %s187
        %s189 = smul.u32 2, %s22
        %p190 = scmp.lt.s32.totalorder %s21, 1
        %s191 = scalar_select %p190, %s21, 1
        %p192 = scmp.lt.s32.totalorder %s189, 1
        %s193 = scalar_select %p192, %s189, 1
        %s194 = smul.addr %s191, 2
        %s195 = sadd.s32 %s193, %s194
        %s196 = smul.addr %s195, 4
        %s197 = scalar_lea.vmem %s0, %s196
        %s198 = smul.u32 2, %s22
        %s199 = smul.u32 2, %s22
        %v200 = vld [vmem:[%s1] sm:$0xff]
        %v201 = vld [vmem:[%s1 + $0x8] sm:$0xff]
        %v202 = vld [vmem:[%s1 + $0x10] sm:$0xff]
        %v203 = vld [vmem:[%s1 + $0x18] sm:$0xff]
        %v204 = vld [vmem:[%s1 + $0x20] sm:$0xff]
        %v205 = vld [vmem:[%s1 + $0x28] sm:$0xff]
        %v206 = vld [vmem:[%s1 + $0x30] sm:$0xff]
        %v207 = vld [vmem:[%s1 + $0x38] sm:$0xff]
        %v208 = vld [vmem:[%s1 + $0x40] sm:$0xff]
        %v209 = vld [vmem:[%s1 + $0x48] sm:$0xff]
        %v210 = vld [vmem:[%s1 + $0x50] sm:$0xff]
        %v211 = vld [vmem:[%s1 + $0x58] sm:$0xff]
        %v212 = vld [vmem:[%s1 + $0x60] sm:$0xff]
        %v213 = vld [vmem:[%s1 + $0x68] sm:$0xff]
        %v214 = vld [vmem:[%s1 + $0x70] sm:$0xff]
        %v215 = vld [vmem:[%s1 + $0x78] sm:$0xff]
        %v216 = vld [vmem:[%s1 + $0x80] sm:$0xff]
        %v217 = vld [vmem:[%s1 + $0x88] sm:$0xff]
        %v218 = vld [vmem:[%s1 + $0x90] sm:$0xff]
        %v219 = vld [vmem:[%s1 + $0x98] sm:$0xff]
        %v220 = vld [vmem:[%s1 + $0xa0] sm:$0xff]
        %v221 = vld [vmem:[%s1 + $0xa8] sm:$0xff]
        %v222 = vld [vmem:[%s1 + $0xb0] sm:$0xff]
        %v223 = vld [vmem:[%s1 + $0xb8] sm:$0xff]
        %v224 = vld [vmem:[%s1 + $0xc0] sm:$0xff]
        %v225 = vld [vmem:[%s1 + $0xc8] sm:$0xff]
        %v226 = vld [vmem:[%s1 + $0xd0] sm:$0xff]
        %v227 = vld [vmem:[%s1 + $0xd8] sm:$0xff]
        %v228 = vld [vmem:[%s1 + $0xe0] sm:$0xff]
        %v229 = vld [vmem:[%s1 + $0xe8] sm:$0xff]
        %v230 = vld [vmem:[%s1 + $0xf0] sm:$0xff]
        %v231 = vld [vmem:[%s1 + $0xf8] sm:$0xff]
        %v232 = vld [vmem:[%s2] sm:$0xff]
        %v233 = vld [vmem:[%s2 + $0x8] sm:$0xff]
        %v234 = vld [vmem:[%s2 + $0x10] sm:$0xff]
        %v235 = vld [vmem:[%s2 + $0x18] sm:$0xff]
        %v236 = vld [vmem:[%s2 + $0x20] sm:$0xff]
        %v237 = vld [vmem:[%s2 + $0x28] sm:$0xff]
        %v238 = vld [vmem:[%s2 + $0x30] sm:$0xff]
        %v239 = vld [vmem:[%s2 + $0x38] sm:$0xff]
        %v240 = vld [vmem:[%s2 + $0x40] sm:$0xff]
        %v241 = vld [vmem:[%s2 + $0x48] sm:$0xff]
        %v242 = vld [vmem:[%s2 + $0x50] sm:$0xff]
        %v243 = vld [vmem:[%s2 + $0x58] sm:$0xff]
        %v244 = vld [vmem:[%s2 + $0x60] sm:$0xff]
        %v245 = vld [vmem:[%s2 + $0x68] sm:$0xff]
        %v246 = vld [vmem:[%s2 + $0x70] sm:$0xff]
        %v247 = vld [vmem:[%s2 + $0x78] sm:$0xff]
        %v248 = vld [vmem:[%s2 + $0x80] sm:$0xff]
        %v249 = vld [vmem:[%s2 + $0x88] sm:$0xff]
        %v250 = vld [vmem:[%s2 + $0x90] sm:$0xff]
        %v251 = vld [vmem:[%s2 + $0x98] sm:$0xff]
        %v252 = vld [vmem:[%s2 + $0xa0] sm:$0xff]
        %v253 = vld [vmem:[%s2 + $0xa8] sm:$0xff]
        %v254 = vld [vmem:[%s2 + $0xb0] sm:$0xff]
        %v255 = vld [vmem:[%s2 + $0xb8] sm:$0xff]
        %v256 = vld [vmem:[%s2 + $0xc0] sm:$0xff]
        %v257 = vld [vmem:[%s2 + $0xc8] sm:$0xff]
        %v258 = vld [vmem:[%s2 + $0xd0] sm:$0xff]
        %v259 = vld [vmem:[%s2 + $0xd8] sm:$0xff]
        %v260 = vld [vmem:[%s2 + $0xe0] sm:$0xff]
        %v261 = vld [vmem:[%s2 + $0xe8] sm:$0xff]
        %v262 = vld [vmem:[%s2 + $0xf0] sm:$0xff]
        %v263 = vld [vmem:[%s2 + $0xf8] sm:$0xff]
        %v264 = vld [vmem:[%s197] sm:$0x77]
        %266 = vset.pattern.permute.xlu0 0
        %267 = vperm.xlu0 %266, %v232
        %v268 = vpop.permute.xlu0 %267
        %271 = vset.pattern.permute.xlu0 0
        %272 = vperm.xlu0 %271, %v233
        %v273 = vpop.permute.xlu0 %272
        %276 = vset.pattern.permute.xlu0 0
        %277 = vperm.xlu0 %276, %v234
        %v278 = vpop.permute.xlu0 %277
        %281 = vset.pattern.permute.xlu0 0
        %282 = vperm.xlu0 %281, %v235
        %v283 = vpop.permute.xlu0 %282
        %286 = vset.pattern.permute.xlu0 0
        %287 = vperm.xlu0 %286, %v236
        %v288 = vpop.permute.xlu0 %287
        %291 = vset.pattern.permute.xlu0 0
        %292 = vperm.xlu0 %291, %v237
        %v293 = vpop.permute.xlu0 %292
        %296 = vset.pattern.permute.xlu0 0
        %297 = vperm.xlu0 %296, %v238
        %v298 = vpop.permute.xlu0 %297
        %301 = vset.pattern.permute.xlu0 0
        %302 = vperm.xlu0 %301, %v239
        %v303 = vpop.permute.xlu0 %302
        %306 = vset.pattern.permute.xlu0 0
        %307 = vperm.xlu0 %306, %v240
        %v308 = vpop.permute.xlu0 %307
        %311 = vset.pattern.permute.xlu0 0
        %312 = vperm.xlu0 %311, %v241
        %v313 = vpop.permute.xlu0 %312
        %316 = vset.pattern.permute.xlu0 0
        %317 = vperm.xlu0 %316, %v242
        %v318 = vpop.permute.xlu0 %317
        %321 = vset.pattern.permute.xlu0 0
        %322 = vperm.xlu0 %321, %v243
        %v323 = vpop.permute.xlu0 %322
        %326 = vset.pattern.permute.xlu0 0
        %327 = vperm.xlu0 %326, %v244
        %v328 = vpop.permute.xlu0 %327
        %331 = vset.pattern.permute.xlu0 0
        %332 = vperm.xlu0 %331, %v245
        %v333 = vpop.permute.xlu0 %332
        %336 = vset.pattern.permute.xlu0 0
        %337 = vperm.xlu0 %336, %v246
        %v338 = vpop.permute.xlu0 %337
        %341 = vset.pattern.permute.xlu0 0
        %342 = vperm.xlu0 %341, %v247
        %v343 = vpop.permute.xlu0 %342
        %346 = vset.pattern.permute.xlu0 0
        %347 = vperm.xlu0 %346, %v248
        %v348 = vpop.permute.xlu0 %347
        %351 = vset.pattern.permute.xlu0 0
        %352 = vperm.xlu0 %351, %v249
        %v353 = vpop.permute.xlu0 %352
        %356 = vset.pattern.permute.xlu0 0
        %357 = vperm.xlu0 %356, %v250
        %v358 = vpop.permute.xlu0 %357
        %361 = vset.pattern.permute.xlu0 0
        %362 = vperm.xlu0 %361, %v251
        %v363 = vpop.permute.xlu0 %362
        %366 = vset.pattern.permute.xlu0 0
        %367 = vperm.xlu0 %366, %v252
        %v368 = vpop.permute.xlu0 %367
        %371 = vset.pattern.permute.xlu0 0
        %372 = vperm.xlu0 %371, %v253
        %v373 = vpop.permute.xlu0 %372
        %376 = vset.pattern.permute.xlu0 0
        %377 = vperm.xlu0 %376, %v254
        %v378 = vpop.permute.xlu0 %377
        %381 = vset.pattern.permute.xlu0 0
        %382 = vperm.xlu0 %381, %v255
        %v383 = vpop.permute.xlu0 %382
        %386 = vset.pattern.permute.xlu0 0
        %387 = vperm.xlu0 %386, %v256
        %v388 = vpop.permute.xlu0 %387
        %391 = vset.pattern.permute.xlu0 0
        %392 = vperm.xlu0 %391, %v257
        %v393 = vpop.permute.xlu0 %392
        %396 = vset.pattern.permute.xlu0 0
        %397 = vperm.xlu0 %396, %v258
        %v398 = vpop.permute.xlu0 %397
        %401 = vset.pattern.permute.xlu0 0
        %402 = vperm.xlu0 %401, %v259
        %v403 = vpop.permute.xlu0 %402
        %406 = vset.pattern.permute.xlu0 0
        %407 = vperm.xlu0 %406, %v260
        %v408 = vpop.permute.xlu0 %407
        %411 = vset.pattern.permute.xlu0 0
        %412 = vperm.xlu0 %411, %v261
        %v413 = vpop.permute.xlu0 %412
        %416 = vset.pattern.permute.xlu0 0
        %417 = vperm.xlu0 %416, %v262
        %v418 = vpop.permute.xlu0 %417
        %421 = vset.pattern.permute.xlu0 0
        %422 = vperm.xlu0 %421, %v263
        %v423 = vpop.permute.xlu0 %422
        %426 = vst [vmem:[#allocation1] ss:$2 sm:$0xff] %v264
        %v427 = vld.sshfl [vmem:[#allocation1] sm:$0xff pattern:$0x75316420]
        %v428 = vld.sshfl [vmem:[#allocation1 + $0x8] sm:$0xff pattern:$0x75316420]
        %vm429 = vcmask 23552
        %v431 = vsel %vm429, %v200, 0
        %v434 = vsel %vm429, %v201, 0
        %v437 = vsel %vm429, %v202, 0
        %v440 = vsel %vm429, %v203, 0
        %v443 = vsel %vm429, %v204, 0
        %v446 = vsel %vm429, %v205, 0
        %v449 = vsel %vm429, %v206, 0
        %v452 = vsel %vm429, %v207, 0
        %v455 = vsel %vm429, %v208, 0
        %v458 = vsel %vm429, %v209, 0
        %v461 = vsel %vm429, %v210, 0
        %v464 = vsel %vm429, %v211, 0
        %v467 = vsel %vm429, %v212, 0
        %v470 = vsel %vm429, %v213, 0
        %v473 = vsel %vm429, %v214, 0
        %v476 = vsel %vm429, %v215, 0
        %v479 = vsel %vm429, %v216, 0
        %v482 = vsel %vm429, %v217, 0
        %v485 = vsel %vm429, %v218, 0
        %v488 = vsel %vm429, %v219, 0
        %v491 = vsel %vm429, %v220, 0
        %v494 = vsel %vm429, %v221, 0
        %v497 = vsel %vm429, %v222, 0
        %v500 = vsel %vm429, %v223, 0
        %v503 = vsel %vm429, %v224, 0
        %v506 = vsel %vm429, %v225, 0
        %v509 = vsel %vm429, %v226, 0
        %v512 = vsel %vm429, %v227, 0
        %v515 = vsel %vm429, %v228, 0
        %v518 = vsel %vm429, %v229, 0
        %v521 = vsel %vm429, %v230, 0
        %v524 = vsel %vm429, %v231, 0
        %vm526 = vcmask 1042432
        %v527 = vsel %vm526, %v427, 0
        %v529 = vsel %vm526, %v428, 0
        %531 = vmatpush.msra.mxu0 0.0
        %532 = vmatpush.msra.mxu0 0.0
        %533 = vmatpush.msra.mxu0 0.0
        %534 = vmatpush.msra.mxu0 0.0
        %535 = vmatpush.msra.mxu0 0.0
        %536 = vmatpush.msra.mxu0 0.0
        %537 = vmatpush.msra.mxu0 0.0
        %538 = vmatpush.msra.mxu0 0.0
        %539 = vmatpush.msra.mxu0 0.0
        %540 = vmatpush.msra.mxu0 0.0
        %541 = vmatpush.msra.mxu0 0.0
        %542 = vmatpush.msra.mxu0 0.0
        %543 = vmatpush.msra.mxu0 0.0
        %544 = vmatpush.msra.mxu0 0.0
        %545 = vmatpush.msra.mxu0 0.0
        %546 = vmatpush.msra.mxu0 %v527
        %547 = vmatmul.f32.gmra.mxu0 %v431
        %v548 = vpop.f32.mrf.mxu0
        %v549 = vadd.f32 %v268, %v548
        %550 = vmatmul.f32.gmra.mxu0 %v434
        %v551 = vpop.f32.mrf.mxu0
        %v552 = vadd.f32 %v273, %v551
        %553 = vmatmul.f32.gmra.mxu0 %v437
        %v554 = vpop.f32.mrf.mxu0
        %v555 = vadd.f32 %v278, %v554
        %556 = vmatmul.f32.gmra.mxu0 %v440
        %v557 = vpop.f32.mrf.mxu0
        %v558 = vadd.f32 %v283, %v557
        %559 = vmatmul.f32.gmra.mxu0 %v443
        %v560 = vpop.f32.mrf.mxu0
        %v561 = vadd.f32 %v288, %v560
        %562 = vmatmul.f32.gmra.mxu0 %v446
        %v563 = vpop.f32.mrf.mxu0
        %v564 = vadd.f32 %v293, %v563
        %565 = vmatmul.f32.gmra.mxu0 %v449
        %v566 = vpop.f32.mrf.mxu0
        %v567 = vadd.f32 %v298, %v566
        %568 = vmatmul.f32.gmra.mxu0 %v452
        %v569 = vpop.f32.mrf.mxu0
        %v570 = vadd.f32 %v303, %v569
        %571 = vmatmul.f32.gmra.mxu0 %v455
        %v572 = vpop.f32.mrf.mxu0
        %v573 = vadd.f32 %v308, %v572
        %574 = vmatmul.f32.gmra.mxu0 %v458
        %v575 = vpop.f32.mrf.mxu0
        %v576 = vadd.f32 %v313, %v575
        %577 = vmatmul.f32.gmra.mxu0 %v461
        %v578 = vpop.f32.mrf.mxu0
        %v579 = vadd.f32 %v318, %v578
        %580 = vmatmul.f32.gmra.mxu0 %v464
        %v581 = vpop.f32.mrf.mxu0
        %v582 = vadd.f32 %v323, %v581
        %583 = vmatmul.f32.gmra.mxu0 %v467
        %v584 = vpop.f32.mrf.mxu0
        %v585 = vadd.f32 %v328, %v584
        %586 = vmatmul.f32.gmra.mxu0 %v470
        %v587 = vpop.f32.mrf.mxu0
        %v588 = vadd.f32 %v333, %v587
        %589 = vmatmul.f32.gmra.mxu0 %v473
        %v590 = vpop.f32.mrf.mxu0
        %v591 = vadd.f32 %v338, %v590
        %592 = vmatmul.f32.gmra.mxu0 %v476
        %v593 = vpop.f32.mrf.mxu0
        %v594 = vadd.f32 %v343, %v593
        %595 = vmatmul.f32.gmra.mxu0 %v479
        %v596 = vpop.f32.mrf.mxu0
        %v597 = vadd.f32 %v348, %v596
        %598 = vmatmul.f32.gmra.mxu0 %v482
        %v599 = vpop.f32.mrf.mxu0
        %v600 = vadd.f32 %v353, %v599
        %601 = vmatmul.f32.gmra.mxu0 %v485
        %v602 = vpop.f32.mrf.mxu0
        %v603 = vadd.f32 %v358, %v602
        %604 = vmatmul.f32.gmra.mxu0 %v488
        %v605 = vpop.f32.mrf.mxu0
        %v606 = vadd.f32 %v363, %v605
        %607 = vmatmul.f32.gmra.mxu0 %v491
        %v608 = vpop.f32.mrf.mxu0
        %v609 = vadd.f32 %v368, %v608
        %610 = vmatmul.f32.gmra.mxu0 %v494
        %v611 = vpop.f32.mrf.mxu0
        %v612 = vadd.f32 %v373, %v611
        %613 = vmatmul.f32.gmra.mxu0 %v497
        %v614 = vpop.f32.mrf.mxu0
        %v615 = vadd.f32 %v378, %v614
        %616 = vmatmul.f32.gmra.mxu0 %v500
        %v617 = vpop.f32.mrf.mxu0
        %v618 = vadd.f32 %v383, %v617
        %619 = vmatmul.f32.gmra.mxu0 %v503
        %v620 = vpop.f32.mrf.mxu0
        %v621 = vadd.f32 %v388, %v620
        %622 = vmatmul.f32.gmra.mxu0 %v506
        %v623 = vpop.f32.mrf.mxu0
        %v624 = vadd.f32 %v393, %v623
        %625 = vmatmul.f32.gmra.mxu0 %v509
        %v626 = vpop.f32.mrf.mxu0
        %v627 = vadd.f32 %v398, %v626
        %628 = vmatmul.f32.gmra.mxu0 %v512
        %v629 = vpop.f32.mrf.mxu0
        %v630 = vadd.f32 %v403, %v629
        %631 = vmatmul.f32.gmra.mxu0 %v515
        %v632 = vpop.f32.mrf.mxu0
        %v633 = vadd.f32 %v408, %v632
        %634 = vmatmul.f32.gmra.mxu0 %v518
        %v635 = vpop.f32.mrf.mxu0
        %v636 = vadd.f32 %v413, %v635
        %637 = vmatmul.f32.gmra.mxu0 %v521
        %v638 = vpop.f32.mrf.mxu0
        %v639 = vadd.f32 %v418, %v638
        %640 = vmatmul.f32.gmra.mxu0 %v524
        %v641 = vpop.f32.mrf.mxu0
        %v642 = vadd.f32 %v423, %v641
        %643 = vdwg.mxu0
        %644 = vmatpush.msra.mxu0 0.0
        %645 = vmatpush.msra.mxu0 0.0
        %646 = vmatpush.msra.mxu0 0.0
        %647 = vmatpush.msra.mxu0 0.0
        %648 = vmatpush.msra.mxu0 0.0
        %649 = vmatpush.msra.mxu0 0.0
        %650 = vmatpush.msra.mxu0 0.0
        %651 = vmatpush.msra.mxu0 0.0
        %652 = vmatpush.msra.mxu0 0.0
        %653 = vmatpush.msra.mxu0 0.0
        %654 = vmatpush.msra.mxu0 0.0
        %655 = vmatpush.msra.mxu0 0.0
        %656 = vmatpush.msra.mxu0 0.0
        %657 = vmatpush.msra.mxu0 0.0
        %658 = vmatpush.msra.mxu0 0.0
        %659 = vmatpush.msra.mxu0 %v529
        %660 = vmatmul.f32.gmra.mxu0 %v431
        %v661 = vpop.f32.mrf.mxu0
        %v662 = vadd.f32 %v268, %v661
        %663 = vmatmul.f32.gmra.mxu0 %v434
        %v664 = vpop.f32.mrf.mxu0
        %v665 = vadd.f32 %v273, %v664
        %666 = vmatmul.f32.gmra.mxu0 %v437
        %v667 = vpop.f32.mrf.mxu0
        %v668 = vadd.f32 %v278, %v667
        %669 = vmatmul.f32.gmra.mxu0 %v440
        %v670 = vpop.f32.mrf.mxu0
        %v671 = vadd.f32 %v283, %v670
        %672 = vmatmul.f32.gmra.mxu0 %v443
        %v673 = vpop.f32.mrf.mxu0
        %v674 = vadd.f32 %v288, %v673
        %675 = vmatmul.f32.gmra.mxu0 %v446
        %v676 = vpop.f32.mrf.mxu0
        %v677 = vadd.f32 %v293, %v676
        %678 = vmatmul.f32.gmra.mxu0 %v449
        %v679 = vpop.f32.mrf.mxu0
        %v680 = vadd.f32 %v298, %v679
        %681 = vmatmul.f32.gmra.mxu0 %v452
        %v682 = vpop.f32.mrf.mxu0
        %v683 = vadd.f32 %v303, %v682
        %684 = vmatmul.f32.gmra.mxu0 %v455
        %v685 = vpop.f32.mrf.mxu0
        %v686 = vadd.f32 %v308, %v685
        %687 = vmatmul.f32.gmra.mxu0 %v458
        %v688 = vpop.f32.mrf.mxu0
        %v689 = vadd.f32 %v313, %v688
        %690 = vmatmul.f32.gmra.mxu0 %v461
        %v691 = vpop.f32.mrf.mxu0
        %v692 = vadd.f32 %v318, %v691
        %693 = vmatmul.f32.gmra.mxu0 %v464
        %v694 = vpop.f32.mrf.mxu0
        %v695 = vadd.f32 %v323, %v694
        %696 = vmatmul.f32.gmra.mxu0 %v467
        %v697 = vpop.f32.mrf.mxu0
        %v698 = vadd.f32 %v328, %v697
        %699 = vmatmul.f32.gmra.mxu0 %v470
        %v700 = vpop.f32.mrf.mxu0
        %v701 = vadd.f32 %v333, %v700
        %702 = vmatmul.f32.gmra.mxu0 %v473
        %v703 = vpop.f32.mrf.mxu0
        %v704 = vadd.f32 %v338, %v703
        %705 = vmatmul.f32.gmra.mxu0 %v476
        %v706 = vpop.f32.mrf.mxu0
        %v707 = vadd.f32 %v343, %v706
        %708 = vmatmul.f32.gmra.mxu0 %v479
        %v709 = vpop.f32.mrf.mxu0
        %v710 = vadd.f32 %v348, %v709
        %711 = vmatmul.f32.gmra.mxu0 %v482
        %v712 = vpop.f32.mrf.mxu0
        %v713 = vadd.f32 %v353, %v712
        %714 = vmatmul.f32.gmra.mxu0 %v485
        %v715 = vpop.f32.mrf.mxu0
        %v716 = vadd.f32 %v358, %v715
        %717 = vmatmul.f32.gmra.mxu0 %v488
        %v718 = vpop.f32.mrf.mxu0
        %v719 = vadd.f32 %v363, %v718
        %720 = vmatmul.f32.gmra.mxu0 %v491
        %v721 = vpop.f32.mrf.mxu0
        %v722 = vadd.f32 %v368, %v721
        %723 = vmatmul.f32.gmra.mxu0 %v494
        %v724 = vpop.f32.mrf.mxu0
        %v725 = vadd.f32 %v373, %v724
        %726 = vmatmul.f32.gmra.mxu0 %v497
        %v727 = vpop.f32.mrf.mxu0
        %v728 = vadd.f32 %v378, %v727
        %729 = vmatmul.f32.gmra.mxu0 %v500
        %v730 = vpop.f32.mrf.mxu0
        %v731 = vadd.f32 %v383, %v730
        %732 = vmatmul.f32.gmra.mxu0 %v503
        %v733 = vpop.f32.mrf.mxu0
        %v734 = vadd.f32 %v388, %v733
        %735 = vmatmul.f32.gmra.mxu0 %v506
        %v736 = vpop.f32.mrf.mxu0
        %v737 = vadd.f32 %v393, %v736
        %738 = vmatmul.f32.gmra.mxu0 %v509
        %v739 = vpop.f32.mrf.mxu0
        %v740 = vadd.f32 %v398, %v739
        %741 = vmatmul.f32.gmra.mxu0 %v512
        %v742 = vpop.f32.mrf.mxu0
        %v743 = vadd.f32 %v403, %v742
        %744 = vmatmul.f32.gmra.mxu0 %v515
        %v745 = vpop.f32.mrf.mxu0
        %v746 = vadd.f32 %v408, %v745
        %747 = vmatmul.f32.gmra.mxu0 %v518
        %v748 = vpop.f32.mrf.mxu0
        %v749 = vadd.f32 %v413, %v748
        %750 = vmatmul.f32.gmra.mxu0 %v521
        %v751 = vpop.f32.mrf.mxu0
        %v752 = vadd.f32 %v418, %v751
        %753 = vmatmul.f32.gmra.mxu0 %v524
        %v754 = vpop.f32.mrf.mxu0
        %v755 = vadd.f32 %v423, %v754
        %756 = vdwg.mxu0
        %v757 = vmul.f32 %v549, 0.2
        %v758 = vmul.f32 %v662, 0.2
        %v759 = vmul.f32 %v552, 0.2
        %v760 = vmul.f32 %v665, 0.2
        %v761 = vmul.f32 %v555, 0.2
        %v762 = vmul.f32 %v668, 0.2
        %v763 = vmul.f32 %v558, 0.2
        %v764 = vmul.f32 %v671, 0.2
        %v765 = vmul.f32 %v561, 0.2
        %v766 = vmul.f32 %v674, 0.2
        %v767 = vmul.f32 %v564, 0.2
        %v768 = vmul.f32 %v677, 0.2
        %v769 = vmul.f32 %v567, 0.2
        %v770 = vmul.f32 %v680, 0.2
        %v771 = vmul.f32 %v570, 0.2
        %v772 = vmul.f32 %v683, 0.2
        %v773 = vmul.f32 %v573, 0.2
        %v774 = vmul.f32 %v686, 0.2
        %v775 = vmul.f32 %v576, 0.2
        %v776 = vmul.f32 %v689, 0.2
        %v777 = vmul.f32 %v579, 0.2
        %v778 = vmul.f32 %v692, 0.2
        %v779 = vmul.f32 %v582, 0.2
        %v780 = vmul.f32 %v695, 0.2
        %v781 = vmul.f32 %v585, 0.2
        %v782 = vmul.f32 %v698, 0.2
        %v783 = vmul.f32 %v588, 0.2
        %v784 = vmul.f32 %v701, 0.2
        %v785 = vmul.f32 %v591, 0.2
        %v786 = vmul.f32 %v704, 0.2
        %v787 = vmul.f32 %v594, 0.2
        %v788 = vmul.f32 %v707, 0.2
        %v789 = vmul.f32 %v597, 0.2
        %v790 = vmul.f32 %v710, 0.2
        %v791 = vmul.f32 %v600, 0.2
        %v792 = vmul.f32 %v713, 0.2
        %v793 = vmul.f32 %v603, 0.2
        %v794 = vmul.f32 %v716, 0.2
        %v795 = vmul.f32 %v606, 0.2
        %v796 = vmul.f32 %v719, 0.2
        %v797 = vmul.f32 %v609, 0.2
        %v798 = vmul.f32 %v722, 0.2
        %v799 = vmul.f32 %v612, 0.2
        %v800 = vmul.f32 %v725, 0.2
        %v801 = vmul.f32 %v615, 0.2
        %v802 = vmul.f32 %v728, 0.2
        %v803 = vmul.f32 %v618, 0.2
        %v804 = vmul.f32 %v731, 0.2
        %v805 = vmul.f32 %v621, 0.2
        %v806 = vmul.f32 %v734, 0.2
        %v807 = vmul.f32 %v624, 0.2
        %v808 = vmul.f32 %v737, 0.2
        %v809 = vmul.f32 %v627, 0.2
        %v810 = vmul.f32 %v740, 0.2
        %v811 = vmul.f32 %v630, 0.2
        %v812 = vmul.f32 %v743, 0.2
        %v813 = vmul.f32 %v633, 0.2
        %v814 = vmul.f32 %v746, 0.2
        %v815 = vmul.f32 %v636, 0.2
        %v816 = vmul.f32 %v749, 0.2
        %v817 = vmul.f32 %v639, 0.2
        %v818 = vmul.f32 %v752, 0.2
        %v819 = vmul.f32 %v642, 0.2
        %v820 = vmul.f32 %v755, 0.2
        %v821 = vmax.f32 %v549, %v757
        %v822 = vmax.f32 %v662, %v758
        %v823 = vmax.f32 %v552, %v759
        %v824 = vmax.f32 %v665, %v760
        %v825 = vmax.f32 %v555, %v761
        %v826 = vmax.f32 %v668, %v762
        %v827 = vmax.f32 %v558, %v763
        %v828 = vmax.f32 %v671, %v764
        %v829 = vmax.f32 %v561, %v765
        %v830 = vmax.f32 %v674, %v766
        %v831 = vmax.f32 %v564, %v767
        %v832 = vmax.f32 %v677, %v768
        %v833 = vmax.f32 %v567, %v769
        %v834 = vmax.f32 %v680, %v770
        %v835 = vmax.f32 %v570, %v771
        %v836 = vmax.f32 %v683, %v772
        %v837 = vmax.f32 %v573, %v773
        %v838 = vmax.f32 %v686, %v774
        %v839 = vmax.f32 %v576, %v775
        %v840 = vmax.f32 %v689, %v776
        %v841 = vmax.f32 %v579, %v777
        %v842 = vmax.f32 %v692, %v778
        %v843 = vmax.f32 %v582, %v779
        %v844 = vmax.f32 %v695, %v780
        %v845 = vmax.f32 %v585, %v781
        %v846 = vmax.f32 %v698, %v782
        %v847 = vmax.f32 %v588, %v783
        %v848 = vmax.f32 %v701, %v784
        %v849 = vmax.f32 %v591, %v785
        %v850 = vmax.f32 %v704, %v786
        %v851 = vmax.f32 %v594, %v787
        %v852 = vmax.f32 %v707, %v788
        %v853 = vmax.f32 %v597, %v789
        %v854 = vmax.f32 %v710, %v790
        %v855 = vmax.f32 %v600, %v791
        %v856 = vmax.f32 %v713, %v792
        %v857 = vmax.f32 %v603, %v793
        %v858 = vmax.f32 %v716, %v794
        %v859 = vmax.f32 %v606, %v795
        %v860 = vmax.f32 %v719, %v796
        %v861 = vmax.f32 %v609, %v797
        %v862 = vmax.f32 %v722, %v798
        %v863 = vmax.f32 %v612, %v799
        %v864 = vmax.f32 %v725, %v800
        %v865 = vmax.f32 %v615, %v801
        %v866 = vmax.f32 %v728, %v802
        %v867 = vmax.f32 %v618, %v803
        %v868 = vmax.f32 %v731, %v804
        %v869 = vmax.f32 %v621, %v805
        %v870 = vmax.f32 %v734, %v806
        %v871 = vmax.f32 %v624, %v807
        %v872 = vmax.f32 %v737, %v808
        %v873 = vmax.f32 %v627, %v809
        %v874 = vmax.f32 %v740, %v810
        %v875 = vmax.f32 %v630, %v811
        %v876 = vmax.f32 %v743, %v812
        %v877 = vmax.f32 %v633, %v813
        %v878 = vmax.f32 %v746, %v814
        %v879 = vmax.f32 %v636, %v815
        %v880 = vmax.f32 %v749, %v816
        %v881 = vmax.f32 %v639, %v817
        %v882 = vmax.f32 %v752, %v818
        %v883 = vmax.f32 %v642, %v819
        %v884 = vmax.f32 %v755, %v820
        %885 = vst [vmem:[%s188] sm:$0xff] %v821
        %886 = vst [vmem:[%s188 + $0x8] sm:$0xff] %v822
        %887 = vst [vmem:[%s188 + $0x10] sm:$0xff] %v823
        %888 = vst [vmem:[%s188 + $0x18] sm:$0xff] %v824
        %889 = vst [vmem:[%s188 + $0x20] sm:$0xff] %v825
        %890 = vst [vmem:[%s188 + $0x28] sm:$0xff] %v826
        %891 = vst [vmem:[%s188 + $0x30] sm:$0xff] %v827
        %892 = vst [vmem:[%s188 + $0x38] sm:$0xff] %v828
        %893 = vst [vmem:[%s188 + $0x40] sm:$0xff] %v829
        %894 = vst [vmem:[%s188 + $0x48] sm:$0xff] %v830
        %895 = vst [vmem:[%s188 + $0x50] sm:$0xff] %v831
        %896 = vst [vmem:[%s188 + $0x58] sm:$0xff] %v832
        %897 = vst [vmem:[%s188 + $0x60] sm:$0xff] %v833
        %898 = vst [vmem:[%s188 + $0x68] sm:$0xff] %v834
        %899 = vst [vmem:[%s188 + $0x70] sm:$0xff] %v835
        %900 = vst [vmem:[%s188 + $0x78] sm:$0xff] %v836
        %901 = vst [vmem:[%s188 + $0x80] sm:$0xff] %v837
        %902 = vst [vmem:[%s188 + $0x88] sm:$0xff] %v838
        %903 = vst [vmem:[%s188 + $0x90] sm:$0xff] %v839
        %904 = vst [vmem:[%s188 + $0x98] sm:$0xff] %v840
        %905 = vst [vmem:[%s188 + $0xa0] sm:$0xff] %v841
        %906 = vst [vmem:[%s188 + $0xa8] sm:$0xff] %v842
        %907 = vst [vmem:[%s188 + $0xb0] sm:$0xff] %v843
        %908 = vst [vmem:[%s188 + $0xb8] sm:$0xff] %v844
        %909 = vst [vmem:[%s188 + $0xc0] sm:$0xff] %v845
        %910 = vst [vmem:[%s188 + $0xc8] sm:$0xff] %v846
        %911 = vst [vmem:[%s188 + $0xd0] sm:$0xff] %v847
        %912 = vst [vmem:[%s188 + $0xd8] sm:$0xff] %v848
        %913 = vst [vmem:[%s188 + $0xe0] sm:$0xff] %v849
        %914 = vst [vmem:[%s188 + $0xe8] sm:$0xff] %v850
        %915 = vst [vmem:[%s188 + $0xf0] sm:$0xff] %v851
        %916 = vst [vmem:[%s188 + $0xf8] sm:$0xff] %v852
        %917 = vst [vmem:[%s188 + $0x100] sm:$0xff] %v853
        %918 = vst [vmem:[%s188 + $0x108] sm:$0xff] %v854
        %919 = vst [vmem:[%s188 + $0x110] sm:$0xff] %v855
        %920 = vst [vmem:[%s188 + $0x118] sm:$0xff] %v856
        %921 = vst [vmem:[%s188 + $0x120] sm:$0xff] %v857
        %922 = vst [vmem:[%s188 + $0x128] sm:$0xff] %v858
        %923 = vst [vmem:[%s188 + $0x130] sm:$0xff] %v859
        %924 = vst [vmem:[%s188 + $0x138] sm:$0xff] %v860
        %925 = vst [vmem:[%s188 + $0x140] sm:$0xff] %v861
        %926 = vst [vmem:[%s188 + $0x148] sm:$0xff] %v862
        %927 = vst [vmem:[%s188 + $0x150] sm:$0xff] %v863
        %928 = vst [vmem:[%s188 + $0x158] sm:$0xff] %v864
        %929 = vst [vmem:[%s188 + $0x160] sm:$0xff] %v865
        %930 = vst [vmem:[%s188 + $0x168] sm:$0xff] %v866
        %931 = vst [vmem:[%s188 + $0x170] sm:$0xff] %v867
        %932 = vst [vmem:[%s188 + $0x178] sm:$0xff] %v868
        %933 = vst [vmem:[%s188 + $0x180] sm:$0xff] %v869
        %934 = vst [vmem:[%s188 + $0x188] sm:$0xff] %v870
        %935 = vst [vmem:[%s188 + $0x190] sm:$0xff] %v871
        %936 = vst [vmem:[%s188 + $0x198] sm:$0xff] %v872
        %937 = vst [vmem:[%s188 + $0x1a0] sm:$0xff] %v873
        %938 = vst [vmem:[%s188 + $0x1a8] sm:$0xff] %v874
        %939 = vst [vmem:[%s188 + $0x1b0] sm:$0xff] %v875
        %940 = vst [vmem:[%s188 + $0x1b8] sm:$0xff] %v876
        %941 = vst [vmem:[%s188 + $0x1c0] sm:$0xff] %v877
        %942 = vst [vmem:[%s188 + $0x1c8] sm:$0xff] %v878
        %943 = vst [vmem:[%s188 + $0x1d0] sm:$0xff] %v879
        %944 = vst [vmem:[%s188 + $0x1d8] sm:$0xff] %v880
        %945 = vst [vmem:[%s188 + $0x1e0] sm:$0xff] %v881
        %946 = vst [vmem:[%s188 + $0x1e8] sm:$0xff] %v882
        %947 = vst [vmem:[%s188 + $0x1f0] sm:$0xff] %v883
        %948 = vst [vmem:[%s188 + $0x1f8] sm:$0xff] %v884
        %s949 = sand.u32 %s109, 1
        %s950 = scalar_lea.sflag [#allocation3], %s949
        %s951 = sand.u32 %s109, 1
        %s952 = smul.addr %s951, 512
        %s953 = scalar_lea.vmem [#allocation2], %s952
        // Predicated region
        $region33: #{tpu_custom_call.1} parent=31 // pred_check
          %p954 = pneg %p119
        $region34: #{tpu_custom_call.1} parent=31 // pred_check_branch
          %956 = sbr.rel (%p954) target = $region36
        $region35: #{tpu_custom_call.1} parent=31 // pred_region
          %s957 = smul.u32 2, %s22
          %959 = vsyncadd %s950, 0
          %s960 = smul.addr %s21, 64
          %s961 = sadd.s32 %s957, %s960
          %s962 = smul.addr %s961, 8
          %s963 = scalar_lea.hbm %s3, %s962
          %s964 = sshll.u32 %s953, 4
          %s965 = int_to_ptr.vmem [resolvable:$true] %s964
          %s966 = sshll.u32 %s963, 4
          %s967 = int_to_ptr.hbm [resolvable:$true] %s966
          %972 = dma.vmem_to_hbm [thread:$0]  %s965, 8192, %s967, %s950, 256, 256, 16
        $region36: #{tpu_custom_call.1} parent=31 // pred_fallthru
          _
      $region32: #{tpu_custom_call.1} parent=5 // pred_fallthru
        _
      %p973 = scmp.le.s32.totalorder 2, %s12
      // Predicated region
      $region37: #{tpu_custom_call.1} parent=5 // pred_check
        %p974 = pneg %p973
      $region38: #{tpu_custom_call.1} parent=5 // pred_check_branch
        %976 = sbr.rel (%p974) target = $region40
      $region39: #{tpu_custom_call.1} parent=5 // pred_region
        %s977 = ssub.s32 %s12, 2
        // Predicated region
        $region41: #{tpu_custom_call.1} parent=39 // pred_check
          %p978 = pneg %p125
        $region42: #{tpu_custom_call.1} parent=39 // pred_check_branch
          %980 = sbr.rel (%p978) target = $region44
        $region43: #{tpu_custom_call.1} parent=39 // pred_region
          %s981 = sand.u32 %s110, 1
          %s982 = scalar_lea.sflag [#allocation3], %s981
          %s983 = sand.u32 %s110, 1
          %s984 = smul.addr %s983, 512
          %s985 = scalar_lea.vmem [#allocation2], %s984
          %987 = dma.done %s982, 8192
        $region44: #{tpu_custom_call.1} parent=39 // pred_fallthru
          _
      $region40: #{tpu_custom_call.1} parent=5 // pred_fallthru
        _
    $region6: #{tpu_custom_call.1} parent=1 // loop_footer
      %s16 = sadd.s32 1, %s12
    $region7: #{tpu_custom_call.1} parent=1 // loop_footer_branch
      %11 = sbr.rel target = $region3
    $region8: #{tpu_custom_call.1} parent=1 // loop_exit
      _
    %988 = vsyncpa [#allocation3], 1
    %s989 = scalar_lea.sflag [#allocation3], 1
    %990 = vsyncpa %s989, 1

</llo_original>
